<compile_context>
chip_gen: v5e
topology: v5e:2x2
jax: 0.10.0
libtpu: 0.0.40
codegen_flags: <defaults>
</compile_context>

<pallas_src>
import functools

import jax
import jax.numpy as jnp
from jax.experimental import pallas as pl
from jax.experimental.pallas import tpu as pltpu

IGNORE_INDEX = 255
_LANE = 128


def _ce2d_kernel(logits_ref, targets_ref, out_ref, *, hw, tp, ragged):
    # logits_ref: (BN, C, TP)   targets_ref: (BN, 1, TP)   out_ref: (1, 1, 8, 128)
    x = logits_ref[...].astype(jnp.float32)       # channels on sublanes, pixels on lanes
    t = targets_ref[...]                          # (BN, 1, TP) int32

    # numerically-stable log-softmax over the channel (sublane) axis
    m = jnp.max(x, axis=1, keepdims=True)         # (BN, 1, TP)
    z = x - m                                     # (BN, C, TP)
    lse = jnp.log(jnp.sum(jnp.exp(z), axis=1, keepdims=True))   # (BN, 1, TP)

    # -log p[target] = lse - z[target]; gather z[target] via one-hot compare
    # (logp itself is never materialized)
    ch = jax.lax.broadcasted_iota(jnp.int32, x.shape, 1)                   # (BN, C, TP)
    picked_z = jnp.sum(jnp.where(ch == t, z, 0.0), axis=1, keepdims=True)  # (BN, 1, TP)

    valid = t != IGNORE_INDEX                     # (BN, 1, TP) bool
    if ragged:
        # mask out-of-bounds pixels of the last (partial) tile; padded window data
        # is blocked by this select before any cross-lane reduction.
        pix = jax.lax.broadcasted_iota(jnp.int32, t.shape, 2) + pl.program_id(1) * tp
        valid = jnp.logical_and(valid, pix < hw)

    loss = jnp.where(valid, lse - picked_z, 0.0)
    cnt = jnp.where(valid, 1.0, 0.0)

    loss_sum = jnp.sum(loss)
    cnt_sum = jnp.sum(cnt)

    # lane-dense (8,128) partial block -> unmasked full-tile store
    row = jax.lax.broadcasted_iota(jnp.int32, (8, _LANE), 0)
    blk = jnp.where(row == 0, loss_sum, jnp.where(row == 1, cnt_sum, 0.0))
    out_ref[...] = blk.reshape(1, 1, 8, _LANE)


def _vmem_capacity_bytes():
    try:
        cap = getattr(pltpu.get_tpu_info(), "vmem_capacity_bytes", None)
        if cap:
            return int(cap)
    except Exception:
        pass
    return 64 << 20   # conservative fallback (v7x per-TC VMEM)


def _choose_tiling(N, C, HW, logit_bytes, vmem_usable):
    """Pick (BN images, TP pixels) per grid step.

    Targets ~4 MiB of input per step; the VMEM budget counts double-buffered
    inputs plus ~6 f32 channel-sized temporaries (x upcast, z, exp(z),
    one-hot/select chains).
    """
    target_in = 4 << 20
    per_pixel_in = C * logit_bytes + 4                     # logits row + int32 target
    per_pixel_vmem = 2 * per_pixel_in + 24 * C + 64        # 2x-buffered IO + f32 temps
    max_px_vmem = max(_LANE, (vmem_usable - (4 << 20)) // per_pixel_vmem)
    px_budget = max(_LANE, min(max_px_vmem, target_in // per_pixel_in))

    if HW > px_budget:
        # tile the pixel axis, lane-aligned (T >= 2 automatically)
        BN = 1
        TP = max(_LANE, (px_budget // _LANE) * _LANE)
        T = -(-HW // TP)
    elif N == 1 and HW > 4 * _LANE:
        # single image that fits in one tile: still split into >=2 lane-aligned
        # tiles so v7x's two TensorCores both get 'parallel' grid steps.
        BN = 1
        TP = ((HW + 2 * _LANE - 1) // (2 * _LANE)) * _LANE   # ~HW/2, lane-aligned
        T = -(-HW // TP)
    else:
        # small feature map: fold images into one step to amortize the fixed
        # per-step cost; keep >=2 batch steps when N > 1 (v7x 2-TC sharding).
        TP = HW
        T = 1
        bn_cap = max(1, px_budget // max(HW, 1))
        if N > 1:
            bn_cap = min(bn_cap, max(1, N // 2))
        BN = 1
        for d in range(min(bn_cap, N), 0, -1):
            if N % d == 0:
                BN = d
                break

    ragged = (HW % TP) != 0
    return BN, TP, T, ragged


def cross_entropy_loss_2d(logits_nchw, targets_nhw):
    """CrossEntropyLoss2d.forward: logits (N,C,H,W) float, targets (N,H,W) int."""
    N, C, H, W = logits_nchw.shape
    HW = H * W

    # NCHW -> (N, C, HW) and (N, 1, HW): pure reshapes, no transpose / HBM copy.
    # Logits keep their native dtype (bf16 stays bf16); kernel upcasts to f32.
    logits = logits_nchw.reshape(N, C, HW)
    if targets_nhw.dtype != jnp.int32:
        targets_nhw = targets_nhw.astype(jnp.int32)   # skipped when already int32
    targets = targets_nhw.reshape(N, 1, HW)

    logit_bytes = jnp.dtype(logits.dtype).itemsize
    vmem_usable = int(_vmem_capacity_bytes() * 0.7)   # ~45 MiB v7x, ~90 MiB v5e/v6e
    BN, TP, T, ragged = _choose_tiling(N, C, HW, logit_bytes, vmem_usable)
    G = N // BN

    # vmem limit derived from actual buffer need (+ headroom), clamped to the chip.
    block_in_bytes = BN * TP * (C * logit_bytes + 4)
    tmp_bytes = 4 * BN * TP * (6 * C + 16)
    need = 2 * (block_in_bytes + 8 * _LANE * 4) + tmp_bytes + (4 << 20)
    vmem_limit = int(max(16 << 20, min(vmem_usable, need)))

    P = N * HW
    cost = pl.CostEstimate(
        flops=int(6 * P * C),
        transcendentals=int(P * (C + 1)),
        bytes_accessed=int(P * C * logit_bytes + P * 4 + G * T * 8 * _LANE * 4),
    )

    kernel = functools.partial(_ce2d_kernel, hw=HW, tp=TP, ragged=ragged)

    partials = pl.pallas_call(
        kernel,
        out_shape=jax.ShapeDtypeStruct((G, T, 8, _LANE), jnp.float32),
        grid_spec=pltpu.PrefetchScalarGridSpec(
            num_scalar_prefetch=0,
            grid=(G, T),
            in_specs=[
                pl.BlockSpec((BN, C, TP), lambda n, j: (n, 0, j)),
                pl.BlockSpec((BN, 1, TP), lambda n, j: (n, 0, j)),
            ],
            out_specs=pl.BlockSpec((1, 1, 8, _LANE), lambda n, j: (n, j, 0, 0)),
        ),
        compiler_params=pltpu.CompilerParams(
            dimension_semantics=("parallel", "parallel"),
            vmem_limit_bytes=vmem_limit,
        ),
        cost_estimate=cost,
    )(logits, targets)

    total_loss = jnp.sum(partials[:, :, 0, 0])
    # per-tile counts are exact integers in f32; sum them in int32 for exactness
    total_cnt = jnp.sum(partials[:, :, 1, 0].astype(jnp.int32)).astype(jnp.float32)
    # size_average=True, weight=None -> mean over non-ignored pixels
    # (NaN if every pixel is ignore_index, matching PyTorch)
    return total_loss / total_cnt


# TODO(synk): optional per-class `weight` vector (module default weight=None) not implemented.
# TODO(synk): for C < 8 the (C, TP) sublane layout pads to 8 sublanes; once mem-bound is
# fixed the v6e/v7x roofline is the single EUP (C exps + 1 log per pixel) — packing
# 8 // C pixel groups per sublane block would recover that; documented, not implemented.


def _reference(logits_nchw, targets_nhw):
    # pure-JAX reference for sanity check
    logp = jax.nn.log_softmax(logits_nchw.astype(jnp.float32), axis=1)  # (N,C,H,W)
    t = targets_nhw.astype(jnp.int32)
    valid = t != IGNORE_INDEX
    t_safe = jnp.where(valid, t, 0)
    picked = jnp.take_along_axis(logp, t_safe[:, None, :, :], axis=1)[:, 0]  # (N,H,W)
    loss = jnp.where(valid, -picked, 0.0)
    return jnp.sum(loss) / jnp.sum(valid.astype(jnp.float32))


if __name__ == "__main__":
    key = jax.random.PRNGKey(0)
    k1, k2, k3 = jax.random.split(key, 3)

    N, C, H, W = 2, 4, 16, 16
    logits = jax.random.normal(k1, (N, C, H, W), dtype=jnp.float32)
    targets = jax.random.randint(k2, (N, H, W), 0, C, dtype=jnp.int32)
    # sprinkle some ignore_index pixels
    ignore_mask = jax.random.bernoulli(k3, 0.1, (N, H, W))
    targets = jnp.where(ignore_mask, IGNORE_INDEX, targets)

    loss = cross_entropy_loss_2d(logits, targets)
    loss = jax.block_until_ready(loss)

    ref = _reference(logits, targets)
    assert jnp.allclose(loss, ref, rtol=1e-5, atol=1e-5), (loss, ref)

    print("KERNEL_OK")
</pallas_src>

<mosaic_0001>
module attributes {stable_mosaic.version = 11 : i64} {
  func.func @_ce2d_kernel(%arg0: i32, %arg1: i32, %arg2: memref<1x4x256xf32, #tpu.memory_space<vmem>>, %arg3: memref<1x1x256xi32, #tpu.memory_space<vmem>>, %arg4: memref<1x1x8x128xf32, #tpu.memory_space<vmem>>) attributes {dimension_semantics = [#tpu.dimension_semantics<parallel>, #tpu.dimension_semantics<parallel>], iteration_bounds = array<i64: 2, 1>, scalar_prefetch = 0 : i64, scratch_operands = 0 : i64, tpu.core_type = #tpu.core_type<tc>, window_params = [{transform_indices = @transform_0, window_bounds = array<i64: 1, 4, 256>}, {transform_indices = @transform_1, window_bounds = array<i64: 1, 1, 256>}, {transform_indices = @transform_2, window_bounds = array<i64: 1, 1, 8, 128>}]} {
    %c0 = arith.constant 0 : index
    %c0_0 = arith.constant 0 : index
    %c0_1 = arith.constant 0 : index
    %0 = vector.load %arg2[%c0, %c0_0, %c0_1] : memref<1x4x256xf32, #tpu.memory_space<vmem>>, vector<1x4x256xf32>
    %c0_2 = arith.constant 0 : index
    %c0_3 = arith.constant 0 : index
    %c0_4 = arith.constant 0 : index
    %1 = vector.load %arg3[%c0_2, %c0_3, %c0_4] : memref<1x1x256xi32, #tpu.memory_space<vmem>>, vector<1x1x256xi32>
    %cst = arith.constant dense<0xFF800000> : vector<1x256xf32>
    %2 = vector.multi_reduction <maximumf>, %0, %cst [1] : vector<1x4x256xf32> to vector<1x256xf32>
    %3 = vector.shape_cast %2 : vector<1x256xf32> to vector<1x1x256xf32>
    %4 = vector.broadcast %3 : vector<1x1x256xf32> to vector<1x4x256xf32>
    %5 = arith.subf %0, %4 : vector<1x4x256xf32>
    %6 = math.exp %5 : vector<1x4x256xf32>
    %cst_5 = arith.constant dense<0.000000e+00> : vector<1x256xf32>
    %7 = vector.multi_reduction <add>, %6, %cst_5 [1] : vector<1x4x256xf32> to vector<1x256xf32>
    %8 = vector.shape_cast %7 : vector<1x256xf32> to vector<1x1x256xf32>
    %9 = math.log %8 : vector<1x1x256xf32>
    %10 = tpu.iota {dimensions = array<i32: 1>} : vector<1x4x256xi32>
    %11 = vector.broadcast %1 : vector<1x1x256xi32> to vector<1x4x256xi32>
    %12 = arith.cmpi eq, %10, %11 : vector<1x4x256xi32>
    %cst_6 = arith.constant 0.000000e+00 : f32
    %13 = vector.broadcast %cst_6 : f32 to vector<1x4x256xf32>
    %14 = arith.select %12, %5, %13 : vector<1x4x256xi1>, vector<1x4x256xf32>
    %cst_7 = arith.constant dense<0.000000e+00> : vector<1x256xf32>
    %15 = vector.multi_reduction <add>, %14, %cst_7 [1] : vector<1x4x256xf32> to vector<1x256xf32>
    %16 = vector.shape_cast %15 : vector<1x256xf32> to vector<1x1x256xf32>
    %c255_i32 = arith.constant 255 : i32
    %17 = vector.broadcast %c255_i32 : i32 to vector<1x1x256xi32>
    %18 = arith.cmpi ne, %1, %17 : vector<1x1x256xi32>
    %19 = arith.subf %9, %16 : vector<1x1x256xf32>
    %cst_8 = arith.constant 0.000000e+00 : f32
    %20 = vector.broadcast %cst_8 : f32 to vector<1x1x256xf32>
    %21 = arith.select %18, %19, %20 : vector<1x1x256xi1>, vector<1x1x256xf32>
    %cst_9 = arith.constant 1.000000e+00 : f32
    %cst_10 = arith.constant 0.000000e+00 : f32
    %22 = vector.broadcast %cst_9 : f32 to vector<1x1x256xf32>
    %23 = vector.broadcast %cst_10 : f32 to vector<1x1x256xf32>
    %24 = arith.select %18, %22, %23 : vector<1x1x256xi1>, vector<1x1x256xf32>
    %25 = vector.shape_cast %21 : vector<1x1x256xf32> to vector<1x1x1x256xf32>
    %cst_11 = arith.constant dense<0.000000e+00> : vector<1xf32>
    %26 = vector.multi_reduction <add>, %25, %cst_11 [1, 2, 3] : vector<1x1x1x256xf32> to vector<1xf32>
    %27 = vector.shape_cast %26 : vector<1xf32> to vector<1x1x1x1xf32>
    %28 = vector.extract %27[0, 0, 0, 0] : f32 from vector<1x1x1x1xf32>
    %29 = vector.shape_cast %24 : vector<1x1x256xf32> to vector<1x1x1x256xf32>
    %cst_12 = arith.constant dense<0.000000e+00> : vector<1xf32>
    %30 = vector.multi_reduction <add>, %29, %cst_12 [1, 2, 3] : vector<1x1x1x256xf32> to vector<1xf32>
    %31 = vector.shape_cast %30 : vector<1xf32> to vector<1x1x1x1xf32>
    %32 = vector.extract %31[0, 0, 0, 0] : f32 from vector<1x1x1x1xf32>
    %33 = tpu.iota {dimensions = array<i32: 0>} : vector<8x128xi32>
    %c0_i32 = arith.constant 0 : i32
    %34 = vector.broadcast %c0_i32 : i32 to vector<8x128xi32>
    %35 = arith.cmpi eq, %33, %34 : vector<8x128xi32>
    %c1_i32 = arith.constant 1 : i32
    %36 = vector.broadcast %c1_i32 : i32 to vector<8x128xi32>
    %37 = arith.cmpi eq, %33, %36 : vector<8x128xi32>
    %cst_13 = arith.constant 0.000000e+00 : f32
    %38 = vector.broadcast %32 : f32 to vector<8x128xf32>
    %39 = vector.broadcast %cst_13 : f32 to vector<8x128xf32>
    %40 = arith.select %37, %38, %39 : vector<8x128xi1>, vector<8x128xf32>
    %41 = vector.broadcast %28 : f32 to vector<8x128xf32>
    %42 = arith.select %35, %41, %40 : vector<8x128xi1>, vector<8x128xf32>
    %43 = vector.shape_cast %42 : vector<8x128xf32> to vector<1x1x8x128xf32>
    %c0_14 = arith.constant 0 : index
    %c0_15 = arith.constant 0 : index
    %c0_16 = arith.constant 0 : index
    %c0_17 = arith.constant 0 : index
    %44 = vector.load %arg4[%c0_14, %c0_15, %c0_16, %c0_17] : memref<1x1x8x128xf32, #tpu.memory_space<vmem>>, vector<1x1x8x128xf32>
    tpu.vector_store %arg4[%c0_14, %c0_15, %c0_16, %c0_17], %43 {strides = array<i32>} : memref<1x1x8x128xf32, #tpu.memory_space<vmem>>, vector<1x1x8x128xf32>,
    return
  }
  func.func @transform_0(%arg0: i32, %arg1: i32) -> (i32, i32, i32) {
    %c0_i32 = arith.constant 0 : i32
    %c0_i32_0 = arith.constant 0 : i32
    return %arg0, %c0_i32, %arg1 : i32, i32, i32
  }
  func.func @transform_1(%arg0: i32, %arg1: i32) -> (i32, i32, i32) {
    %c0_i32 = arith.constant 0 : i32
    %c0_i32_0 = arith.constant 0 : i32
    return %arg0, %c0_i32, %arg1 : i32, i32, i32
  }
  func.func @transform_2(%arg0: i32, %arg1: i32) -> (i32, i32, i32, i32) {
    %c0_i32 = arith.constant 0 : i32
    %c0_i32_0 = arith.constant 0 : i32
    %c0_i32_1 = arith.constant 0 : i32
    return %arg0, %arg1, %c0_i32, %c0_i32_0 : i32, i32, i32, i32
  }
}

</mosaic_0001>

<llo_original>
// kernel: tpu_custom_call.1
$region0: #{tpu_custom_call.1}
  #allocation0 [shape = 'u32[]', space=smem, size = 0x4, offset = 0x4, fixed_abs, tag = 'smem constant byte address 0x4 - core index']
  #allocation1 [shape = 'u32[72,128]{1,0:T(1,128)}', space=vmem, size = 0x9000, scoped, tag = 'internal scratch']
  %s0 = inlined_call_operand.hbm [shape: f32[2,4,256], index: 0, kind: input, shape index: {}]
  %s1 = inlined_call_operand.hbm [shape: s32[2,1,256], index: 1, kind: input, shape index: {}]
  %s2 = inlined_call_operand.hbm [shape: f32[2,1,8,128], index: 2, kind: output, shape index: {}]
  %s3 = sld [smem:[#allocation0]]
  $region49: #{tpu_custom_call.1} parent=0
    _
  %s5 = ssub.s32 1, %s3
  %s6 = scalar_select 0, %s5, %s3
  $region1: #{tpu_custom_call.1} parent=0
    #allocation2 [shape = 'u8[8192]{0}', space=vmem, size = 0x2000, scoped, tag = 'input window, operand 0']
    #allocation3 [shape = 's32[2]{0}', space=sflag, size = 0x8, scoped, tag = 'scoped memory for tpu_custom_call.1']
    #allocation4 [shape = 's32[2]{0}', space=sflag, size = 0x8, scoped, tag = 'scoped memory for tpu_custom_call.1']
    #allocation5 [shape = 'u8[2048]{0}', space=vmem, size = 0x800, scoped, tag = 'input window, operand 1']
    #allocation6 [shape = 's32[2]{0}', space=sflag, size = 0x8, scoped, tag = 'scoped memory for tpu_custom_call.1']
    #allocation7 [shape = 'u8[8192]{0}', space=vmem, size = 0x2000, scoped, tag = 'output window, operand 0']
    %7 = vsyncpa [#allocation3], 0
    %s8 = scalar_lea.sflag [#allocation3], 1
    %9 = vsyncpa %s8, 0
    %10 = vsyncpa [#allocation6], 0
    %s11 = scalar_lea.sflag [#allocation6], 1
    %12 = vsyncpa %s11, 0
    %13 = vsyncpa [#allocation4], 0
    %s14 = scalar_lea.sflag [#allocation4], 1
    %15 = vsyncpa %s14, 0
    loop: start=0, step=1, limit=4
    $region2: #{tpu_custom_call.1} parent=1 // loop_pre_header
      _
    $region3: #{tpu_custom_call.1} parent=1 // loop_header
      %s17 = sphi 0, %s21
      %p18 = scmp.ge.s32.totalorder %s17, 4
      %s24 = sphi 0, %s36
      %s25 = sphi 0, %s32
      %s26 = sphi 0, %s24
      %s27 = sphi 0, %s25
      %s28 = sphi 0, %s26
      %s29 = sphi 0, %s27
      %s41 = sphi 0, %s43
      %s44 = sphi 0, %s41
      %s45 = sphi 0, %s44
      %s61 = sphi 0, %s45
      %s69 = sphi 0, %s71
      %s72 = sphi 0, %s69
      %s73 = sphi 0, %s72
      %s89 = sphi 0, %s73
      %s97 = sphi 0, %s99
      %s100 = sphi 0, %s97
      %s101 = sphi 0, %s100
      %s117 = sphi 0, %s101
    $region4: #{tpu_custom_call.1} parent=1 // loop_header_branch
      %20 = sbr.rel (%p18) target = $region8
    $region5: #{tpu_custom_call.1} parent=1 // loop_body
      %s22 = ssub.s32 %s17, 1
      %s23 = ssub.s32 %s17, 2
      %s30 = sadd.s32 1, %s25
      %p31 = scmp.ge.s32.totalorder %s30, 1
      %s32 = scalar_select %p31, 0, %s30
      %s33 = sadd.s32 1, %s24
      %s34 = scalar_select %p31, %s33, %s24
      %p35 = scmp.ge.s32.totalorder %s34, 2
      %s36 = scalar_select %p35, 0, %s34
      %s37 = ssub.s32 %s24, %s36
      %s38 = ssub.s32 %s25, %s32
      %s39 = sor.u32 %s37, %s38
      %p40 = scmp.eq.s32.totalorder %s39, 0
      %s42 = sadd.s32 %s41, 1
      %s43 = scalar_select %p40, %s41, %s42
      %p46 = pneg %p40
      %p47 = scmp.eq.s32.totalorder %s17, 1
      %p48 = por %p46, %p47
      %p49 = scmp.ne.s32.totalorder %s41, %s44
      %p50 = scmp.eq.s32.totalorder %s17, 0
      %p51 = por %p49, %p50
      %p52 = scmp.ne.s32.totalorder %s41, %s44
      %p53 = scmp.eq.s32.totalorder %s22, 1
      %p54 = por %p52, %p53
      %p55 = scmp.ne.s32.totalorder %s44, %s45
      %p56 = scmp.eq.s32.totalorder %s22, 0
      %p57 = por %p55, %p56
      %p58 = scmp.ne.s32.totalorder %s44, %s45
      %p59 = scmp.eq.s32.totalorder %s23, 1
      %p60 = por %p58, %p59
      %p62 = scmp.ne.s32.totalorder %s45, %s61
      %p63 = scmp.eq.s32.totalorder %s23, 0
      %p64 = por %p62, %p63
      %s65 = ssub.s32 %s24, %s36
      %s66 = ssub.s32 %s25, %s32
      %s67 = sor.u32 %s65, %s66
      %p68 = scmp.eq.s32.totalorder %s67, 0
      %s70 = sadd.s32 %s69, 1
      %s71 = scalar_select %p68, %s69, %s70
      %p74 = pneg %p68
      %p75 = scmp.eq.s32.totalorder %s17, 1
      %p76 = por %p74, %p75
      %p77 = scmp.ne.s32.totalorder %s69, %s72
      %p78 = scmp.eq.s32.totalorder %s17, 0
      %p79 = por %p77, %p78
      %p80 = scmp.ne.s32.totalorder %s69, %s72
      %p81 = scmp.eq.s32.totalorder %s22, 1
      %p82 = por %p80, %p81
      %p83 = scmp.ne.s32.totalorder %s72, %s73
      %p84 = scmp.eq.s32.totalorder %s22, 0
      %p85 = por %p83, %p84
      %p86 = scmp.ne.s32.totalorder %s72, %s73
      %p87 = scmp.eq.s32.totalorder %s23, 1
      %p88 = por %p86, %p87
      %p90 = scmp.ne.s32.totalorder %s73, %s89
      %p91 = scmp.eq.s32.totalorder %s23, 0
      %p92 = por %p90, %p91
      %s93 = ssub.s32 %s24, %s36
      %s94 = ssub.s32 %s25, %s32
      %s95 = sor.u32 %s93, %s94
      %p96 = scmp.eq.s32.totalorder %s95, 0
      %s98 = sadd.s32 %s97, 1
      %s99 = scalar_select %p96, %s97, %s98
      %p102 = pneg %p96
      %p103 = scmp.eq.s32.totalorder %s17, 1
      %p104 = por %p102, %p103
      %p105 = scmp.ne.s32.totalorder %s97, %s100
      %p106 = scmp.eq.s32.totalorder %s17, 0
      %p107 = por %p105, %p106
      %p108 = scmp.ne.s32.totalorder %s97, %s100
      %p109 = scmp.eq.s32.totalorder %s22, 1
      %p110 = por %p108, %p109
      %p111 = scmp.ne.s32.totalorder %s100, %s101
      %p112 = scmp.eq.s32.totalorder %s22, 0
      %p113 = por %p111, %p112
      %p114 = scmp.ne.s32.totalorder %s100, %s101
      %p115 = scmp.eq.s32.totalorder %s23, 1
      %p116 = por %p114, %p115
      %p118 = scmp.ne.s32.totalorder %s101, %s117
      %p119 = scmp.eq.s32.totalorder %s23, 0
      %p120 = por %p118, %p119
      %p121 = scmp.le.s32.totalorder 1, %s17
      %p122 = scmp.lt.s32.totalorder %s17, 3
      %p123 = pnand %p121, %p122
      %p124 = pneg %p123
      // Predicated region
      $region9: #{tpu_custom_call.1} parent=5 // pred_check
        _
      $region10: #{tpu_custom_call.1} parent=5 // pred_check_branch
        %126 = sbr.rel (%p123) target = $region12
      $region11: #{tpu_custom_call.1} parent=5 // pred_region
        %s127 = ssub.s32 %s17, 1
      $region12: #{tpu_custom_call.1} parent=5 // pred_fallthru
        _
      %p128 = scmp.lt.s32.totalorder %s17, 2
      // Predicated region
      $region13: #{tpu_custom_call.1} parent=5 // pred_check
        %p129 = pneg %p128
      $region14: #{tpu_custom_call.1} parent=5 // pred_check_branch
        %131 = sbr.rel (%p129) target = $region16
      $region15: #{tpu_custom_call.1} parent=5 // pred_region
        // Predicated region
        $region17: #{tpu_custom_call.1} parent=15 // pred_check
          %p132 = pneg %p51
        $region18: #{tpu_custom_call.1} parent=15 // pred_check_branch
          %134 = sbr.rel (%p132) target = $region20
        $region19: #{tpu_custom_call.1} parent=15 // pred_region
          %s135 = sand.u32 %s41, 1
          %s136 = scalar_lea.sflag [#allocation3], %s135
          %s137 = sand.u32 %s41, 1
          %s138 = smul.addr %s137, 8
          %s139 = scalar_lea.vmem [#allocation2], %s138
          %s140 = smul.u32 2, %s25
          %142 = vsyncadd %s136, 0
          %s143 = smul.addr %s24, 2
          %s144 = sadd.s32 %s140, %s143
          %s145 = smul.addr %s144, 4
          %s146 = scalar_lea.hbm %s0, %s145
          %s148 = sshll.u32 %s146, 4
          %s149 = int_to_ptr.hbm [resolvable:$true] %s148
          %s150 = sshll.u32 %s139, 4
          %s151 = int_to_ptr.vmem [resolvable:$true] %s150
          %153 = dma.hbm_to_vmem [thread:$0]  %s149, 128, %s151, %s136
        $region20: #{tpu_custom_call.1} parent=15 // pred_fallthru
          _
        // Predicated region
        $region21: #{tpu_custom_call.1} parent=15 // pred_check
          %p154 = pneg %p79
        $region22: #{tpu_custom_call.1} parent=15 // pred_check_branch
          %156 = sbr.rel (%p154) target = $region24
        $region23: #{tpu_custom_call.1} parent=15 // pred_region
          %s157 = sand.u32 %s69, 1
          %s158 = scalar_lea.sflag [#allocation6], %s157
          %s159 = sand.u32 %s69, 1
          %s160 = smul.addr %s159, 2
          %s161 = scalar_lea.vmem [#allocation5], %s160
          %s162 = smul.u32 2, %s25
          %164 = vsyncadd %s158, 0
          %s165 = smul.addr %s24, 2
          %s166 = sadd.s32 %s162, %s165
          %s167 = scalar_lea.hbm %s1, %s166
          %s169 = sshll.u32 %s167, 4
          %s170 = int_to_ptr.hbm [resolvable:$true] %s169
          %s171 = sshll.u32 %s161, 4
          %s172 = int_to_ptr.vmem [resolvable:$true] %s171
          %174 = dma.hbm_to_vmem [thread:$0]  %s170, 32, %s172, %s158
        $region24: #{tpu_custom_call.1} parent=15 // pred_fallthru
          _
      $region16: #{tpu_custom_call.1} parent=5 // pred_fallthru
        _
      %p175 = scmp.le.s32.totalorder 1, %s17
      %p176 = scmp.lt.s32.totalorder %s17, 3
      %p177 = pnand %p175, %p176
      %p178 = pneg %p177
      // Predicated region
      $region25: #{tpu_custom_call.1} parent=5 // pred_check
        _
      $region26: #{tpu_custom_call.1} parent=5 // pred_check_branch
        %180 = sbr.rel (%p177) target = $region28
      $region27: #{tpu_custom_call.1} parent=5 // pred_region
        %s181 = ssub.s32 %s17, 1
        %s182 = sand.u32 %s44, 1
        %s183 = scalar_lea.sflag [#allocation3], %s182
        %s184 = sand.u32 %s44, 1
        %s185 = smul.addr %s184, 8
        %s186 = scalar_lea.vmem [#allocation2], %s185
        // Predicated region
        $region29: #{tpu_custom_call.1} parent=27 // pred_check
          %p187 = pneg %p57
        $region30: #{tpu_custom_call.1} parent=27 // pred_check_branch
          %189 = sbr.rel (%p187) target = $region32
        $region31: #{tpu_custom_call.1} parent=27 // pred_region
          %191 = dma.done %s183, 128
        $region32: #{tpu_custom_call.1} parent=27 // pred_fallthru
          _
        %s192 = sand.u32 %s72, 1
        %s193 = scalar_lea.sflag [#allocation6], %s192
        %s194 = sand.u32 %s72, 1
        %s195 = smul.addr %s194, 2
        %s196 = scalar_lea.vmem [#allocation5], %s195
        // Predicated region
        $region33: #{tpu_custom_call.1} parent=27 // pred_check
          %p197 = pneg %p85
        $region34: #{tpu_custom_call.1} parent=27 // pred_check_branch
          %199 = sbr.rel (%p197) target = $region36
        $region35: #{tpu_custom_call.1} parent=27 // pred_region
          %201 = dma.done %s193, 32
        $region36: #{tpu_custom_call.1} parent=27 // pred_fallthru
          _
        %s202 = sand.u32 %s44, 1
        %s203 = scalar_lea.sflag [#allocation3], %s202
        %s204 = sand.u32 %s44, 1
        %s205 = smul.addr %s204, 8
        %s206 = scalar_lea.vmem [#allocation2], %s205
        %p207 = pneg %p57
        %p208 = pneg %p54
        %s209 = sand.u32 %s72, 1
        %s210 = scalar_lea.sflag [#allocation6], %s209
        %s211 = sand.u32 %s72, 1
        %s212 = smul.addr %s211, 2
        %s213 = scalar_lea.vmem [#allocation5], %s212
        %p214 = pneg %p85
        %p215 = pneg %p82
        %p216 = pneg %p113
        %p217 = pneg %p110
        %s218 = sand.u32 %s100, 1
        %s219 = scalar_lea.sflag [#allocation4], %s218
        %s220 = sand.u32 %s100, 1
        %s221 = smul.addr %s220, 8
        %s222 = scalar_lea.vmem [#allocation7], %s221
        %s223 = smul.u32 2, %s27
        %s224 = smul.u32 2, %s27
        %v225 = vld [vmem:[%s186] sm:$0xff]
        %v226 = vld [vmem:[%s196] sm:$0x3]
        %228 = vst [vmem:[#allocation1] ss:$2 sm:$0xff] %v225
        %v229 = vld.sshfl [vmem:[#allocation1] sm:$0xff pattern:$0x75316420]
        %v230 = vld.sshfl [vmem:[#allocation1 + $0x8] sm:$0xff pattern:$0x75316420]
        %vm233 = vcmask 1043456
        %v234 = vsel %vm233, %v229, -inf
        %v235 = vrot.slane %v234, 4
        %v236 = vmax.f32 %v234, %v235
        %v237 = vrot.slane %v236, 2
        %v238 = vmax.f32 %v236, %v237
        %v239 = vrot.slane %v238, 1
        %v240 = vmax.f32 %v238, %v239
        %v241 = vsel %vm233, %v230, -inf
        %v242 = vrot.slane %v241, 4
        %v243 = vmax.f32 %v241, %v242
        %v244 = vrot.slane %v243, 2
        %v245 = vmax.f32 %v243, %v244
        %v246 = vrot.slane %v245, 1
        %v247 = vmax.f32 %v245, %v246
        %v250 = vrot.slane %v247, 4
        %v251 = vsel %vm233, %v240, %v250
        %v253 = vsub.f32 %v225, %v251
        %v254 = vmul.f32 %v253, 1.442695
        %v255 = vpow.pop %v254
        %257 = vst [vmem:[#allocation1] ss:$2 sm:$0xff] %v255
        %v258 = vld.sshfl [vmem:[#allocation1] sm:$0xff pattern:$0x75316420]
        %v259 = vld.sshfl [vmem:[#allocation1 + $0x8] sm:$0xff pattern:$0x75316420]
        %v262 = vsel %vm233, %v258, 0.0
        %v263 = vrot.slane %v262, 4
        %v264 = vadd.f32 %v262, %v263
        %v265 = vrot.slane %v264, 2
        %v266 = vadd.f32 %v264, %v265
        %v267 = vrot.slane %v266, 1
        %v268 = vadd.f32 %v266, %v267
        %v269 = vsel %vm233, %v259, 0.0
        %v270 = vrot.slane %v269, 4
        %v271 = vadd.f32 %v269, %v270
        %v272 = vrot.slane %v271, 2
        %v273 = vadd.f32 %v271, %v272
        %v274 = vrot.slane %v273, 1
        %v275 = vadd.f32 %v273, %v274
        %v276 = vlog2.pop %v268
        %v277 = vmul.f32 %v276, 0.6931472
        %v278 = vlog2.pop %v275
        %v279 = vmul.f32 %v278, 0.6931472
        %v280 = vlaneseq
        %v281 = vshrl.u32 %v280, 7
        %v282 = vperm.slane %v226, 0
        %v283 = vperm.slane %v226, 1
        %vm284 = vcmp.eq.s32.totalorder %v281, %v282
        %vm285 = vcmp.eq.s32.totalorder %v281, %v283
        %287 = vst [vmem:[#allocation1] ss:$2 sm:$0xff] %v253
        %v288 = vld.sshfl [vmem:[#allocation1] sm:$0xff pattern:$0x75316420]
        %v289 = vld.sshfl [vmem:[#allocation1 + $0x8] sm:$0xff pattern:$0x75316420]
        %v292 = vsel %vm284, %v288, 0.0
        %v293 = vsel %vm285, %v289, 0.0
        %v294 = vsel %vm233, %v292, 0.0
        %v295 = vrot.slane %v294, 4
        %v296 = vadd.f32 %v294, %v295
        %v297 = vrot.slane %v296, 2
        %v298 = vadd.f32 %v296, %v297
        %v299 = vrot.slane %v298, 1
        %v300 = vadd.f32 %v298, %v299
        %v301 = vsel %vm233, %v293, 0.0
        %v302 = vrot.slane %v301, 4
        %v303 = vadd.f32 %v301, %v302
        %v304 = vrot.slane %v303, 2
        %v305 = vadd.f32 %v303, %v304
        %v306 = vrot.slane %v305, 1
        %v307 = vadd.f32 %v305, %v306
        %vm308 = vcmp.ne.s32.totalorder %v226, 255
        %v309 = vsub.f32 %v277, %v300
        %v310 = vsub.f32 %v279, %v307
        %v313 = vrot.slane %v310, 7
        %vm314 = vcmask 1040384
        %v315 = vsel %vm314, %v309, %v313
        %v317 = vsel %vm308, %v315, 0.0
        %v318 = vsel %vm308, 1.0, 0.0
        %v320 = vperm.slane %v317, 0
        %v321 = vperm.slane %v317, 1
        %v324 = vsel %vm314, %v320, 0.0
        %v325 = vsel %vm314, %v321, 0.0
        %v326 = vadd.f32 %v324, %v325
        %327 = vadd.xlane.f32.xlu0 %v326
        %v328 = vpop.xlane.xlu0 %327
        %v329 = vrot.slane %v328, 4
        %v330 = vadd.f32 %v328, %v329
        %v331 = vrot.slane %v330, 2
        %v332 = vadd.f32 %v330, %v331
        %v333 = vrot.slane %v332, 1
        %v334 = vadd.f32 %v332, %v333
        %s335 = vtos %v334
        %v337 = vperm.slane %v318, 0
        %v338 = vperm.slane %v318, 1
        %v341 = vsel %vm314, %v337, 0.0
        %v342 = vsel %vm314, %v338, 0.0
        %v343 = vadd.f32 %v341, %v342
        %344 = vadd.xlane.f32.xlu0 %v343
        %v345 = vpop.xlane.xlu0 %344
        %v346 = vrot.slane %v345, 4
        %v347 = vadd.f32 %v345, %v346
        %v348 = vrot.slane %v347, 2
        %v349 = vadd.f32 %v347, %v348
        %v350 = vrot.slane %v349, 1
        %v351 = vadd.f32 %v349, %v350
        %s352 = vtos %v351
        %vm353 = vcmp.eq.s32.totalorder %v281, 0
        %vm354 = vcmp.eq.s32.totalorder %v281, 1
        %v355 = vstv %s352
        %v356 = vsel %vm354, %v355, 0.0
        %v357 = vstv %s335
        %v358 = vsel %vm353, %v357, %v356
        %359 = vst [vmem:[%s222] sm:$0xff] %v358
        %s360 = sand.u32 %s100, 1
        %s361 = scalar_lea.sflag [#allocation4], %s360
        %s362 = sand.u32 %s100, 1
        %s363 = smul.addr %s362, 8
        %s364 = scalar_lea.vmem [#allocation7], %s363
        // Predicated region
        $region37: #{tpu_custom_call.1} parent=27 // pred_check
          %p365 = pneg %p110
        $region38: #{tpu_custom_call.1} parent=27 // pred_check_branch
          %367 = sbr.rel (%p365) target = $region40
        $region39: #{tpu_custom_call.1} parent=27 // pred_region
          %369 = vsyncadd %s361, 0
          %s370 = sadd.s32 %s27, %s26
          %s371 = smul.addr %s370, 8
          %s372 = scalar_lea.hbm %s2, %s371
          %s374 = sshll.u32 %s364, 4
          %s375 = int_to_ptr.vmem [resolvable:$true] %s374
          %s376 = sshll.u32 %s372, 4
          %s377 = int_to_ptr.hbm [resolvable:$true] %s376
          %379 = dma.vmem_to_hbm [thread:$0]  %s375, 128, %s377, %s361
        $region40: #{tpu_custom_call.1} parent=27 // pred_fallthru
          _
      $region28: #{tpu_custom_call.1} parent=5 // pred_fallthru
        _
      %p380 = scmp.le.s32.totalorder 2, %s17
      // Predicated region
      $region41: #{tpu_custom_call.1} parent=5 // pred_check
        %p381 = pneg %p380
      $region42: #{tpu_custom_call.1} parent=5 // pred_check_branch
        %383 = sbr.rel (%p381) target = $region44
      $region43: #{tpu_custom_call.1} parent=5 // pred_region
        %s384 = ssub.s32 %s17, 2
        // Predicated region
        $region45: #{tpu_custom_call.1} parent=43 // pred_check
          %p385 = pneg %p116
        $region46: #{tpu_custom_call.1} parent=43 // pred_check_branch
          %387 = sbr.rel (%p385) target = $region48
        $region47: #{tpu_custom_call.1} parent=43 // pred_region
          %s388 = sand.u32 %s101, 1
          %s389 = scalar_lea.sflag [#allocation4], %s388
          %s390 = sand.u32 %s101, 1
          %s391 = smul.addr %s390, 8
          %s392 = scalar_lea.vmem [#allocation7], %s391
          %394 = dma.done %s389, 128
        $region48: #{tpu_custom_call.1} parent=43 // pred_fallthru
          _
      $region44: #{tpu_custom_call.1} parent=5 // pred_fallthru
        _
    $region6: #{tpu_custom_call.1} parent=1 // loop_footer
      %s21 = sadd.s32 1, %s17
    $region7: #{tpu_custom_call.1} parent=1 // loop_footer_branch
      %16 = sbr.rel target = $region3
    $region8: #{tpu_custom_call.1} parent=1 // loop_exit
      _
    %395 = vsyncpa [#allocation3], 1
    %s396 = scalar_lea.sflag [#allocation3], 1
    %397 = vsyncpa %s396, 1
    %398 = vsyncpa [#allocation6], 1
    %s399 = scalar_lea.sflag [#allocation6], 1
    %400 = vsyncpa %s399, 1
    %401 = vsyncpa [#allocation4], 1
    %s402 = scalar_lea.sflag [#allocation4], 1
    %403 = vsyncpa %s402, 1

</llo_original>
